<compile_context>
chip_gen: v7x
topology: tpu7x:2x2x1
jax: 0.10.0
libtpu: 0.0.40
codegen_flags: <defaults>
</compile_context>

<pallas_src>
import functools
import math

import jax
import jax.numpy as jnp
from jax.experimental import pallas as pl
from jax.experimental.pallas import tpu as pltpu


# ------------------------------ Pallas kernel --------------------------------

def _softpool_kernel(x_ref, w_ref, b_ref, g_ref, beta_ref, out_ref,
                     m_sc, l_sc, acc_sc, *, ln_eps):
    j = pl.program_id(1)                                   # sequence (reduction) axis

    @pl.when(j == 0)
    def _init():
        m_sc[...] = jnp.full_like(m_sc, -jnp.inf)
        l_sc[...] = jnp.zeros_like(l_sc)
        acc_sc[...] = jnp.zeros_like(acc_sc)

    # Native-dtype DMA; upcast to f32 for compute (v5e VPU/EUP have no bf16).
    x = x_ref[...].astype(jnp.float32)                     # (tb, tl, D)
    w = w_ref[...].astype(jnp.float32)                     # (1, D)
    b = b_ref[...].astype(jnp.float32)                     # (1, 1)

    # fc(x): elementwise mul + lane reduce; keepdims keeps L on sublanes so the
    # broadcast back against x is layout-free (no XLU relayout, no 1-wide matmul).
    logits = jnp.sum(x * w, axis=-1, keepdims=True) + b    # (tb, tl, 1)

    # Online softmax over the sequence axis, streamed across the L grid axis.
    m_blk = jnp.max(logits, axis=1)                        # (tb, 1) sublane reduce
    m_new = jnp.maximum(m_sc[...], m_blk)                  # (tb, 1)
    alpha = jnp.exp(m_sc[...] - m_new)                     # (tb, 1) rescale factor
    e = jnp.exp(logits - m_new[:, None, :])                # (tb, tl, 1)

    l_sc[...] = alpha * l_sc[...] + jnp.sum(e, axis=1)           # (tb, 1)
    acc_sc[...] = alpha * acc_sc[...] + jnp.sum(x * e, axis=1)   # (tb, D) unnormalized
    m_sc[...] = m_new

    @pl.when(j == pl.num_programs(1) - 1)
    def _finalize():
        # Deferred softmax normalization: one tiny EUP reciprocal on (tb, 1).
        pooled = acc_sc[...] * pl.reciprocal(l_sc[...], approx=True)    # (tb, D)
        # LayerNorm over D (biased variance, matching PyTorch).
        mean = jnp.mean(pooled, axis=-1, keepdims=True)
        cent = pooled - mean
        var = jnp.mean(cent * cent, axis=-1, keepdims=True)
        xhat = cent * jax.lax.rsqrt(var + ln_eps)
        g = g_ref[...].astype(jnp.float32)
        bt = beta_ref[...].astype(jnp.float32)
        out_ref[...] = (xhat * g + bt).astype(out_ref.dtype)


# -------------------------------- wrapper -------------------------------------

def _pick_block(dim, target, base=8):
    """Largest multiple of `base` <= target that divides `dim`; else the full dim."""
    if dim <= target:
        return dim
    best = dim
    t = base
    while t <= target:
        if dim % t == 0:
            best = t
        t += base
    return best


def softpool_forward(x, w, b, gamma, beta, *, ln_eps=1e-5,
                     block_b=None, block_l=None, out_dtype=None):
    """SoftPoolModule forward.

    x:     (B, L, D)  input (any float dtype; DMA'd natively, upcast in-kernel)
    w:     (1, D)     fc.weight  (output_dim = 1)
    b:     (1,)       fc.bias
    gamma: (D,)       layer_norm.weight
    beta:  (D,)       layer_norm.bias
    returns (B, D) in x.dtype (or out_dtype)
    """
    B, L, D = x.shape
    assert w.shape == (1, D), "only output_dim=1 (module default) is supported"
    out_dtype = out_dtype or x.dtype
    itemsize = jnp.dtype(x.dtype).itemsize

    # Per-step x block targets ~1 MiB: big enough to amortize the ~0.35 us grid-step
    # overhead, small enough that 2x double-buffered inputs stay well inside the
    # default scoped VMEM on every generation (16 MiB v5e, 32 MiB v6e/v7x).
    if block_b is None:
        block_b = _pick_block(B, 64)
    if block_l is None:
        target_l = max(8, (1 << 20) // max(1, block_b * D * itemsize))
        block_l = _pick_block(L, target_l)
    assert B % block_b == 0 and L % block_l == 0

    grid = (B // block_b, L // block_l)
    kernel = functools.partial(_softpool_kernel, ln_eps=ln_eps)

    return pl.pallas_call(
        kernel,
        out_shape=jax.ShapeDtypeStruct((B, D), out_dtype),
        grid_spec=pltpu.PrefetchScalarGridSpec(
            num_scalar_prefetch=0,
            grid=grid,
            in_specs=[
                pl.BlockSpec((block_b, block_l, D), lambda i, j: (i, j, 0)),  # x
                pl.BlockSpec((1, D), lambda i, j: (0, 0)),                    # fc weight
                pl.BlockSpec((1, 1), lambda i, j: (0, 0)),                    # fc bias
                pl.BlockSpec((1, D), lambda i, j: (0, 0)),                    # ln gamma
                pl.BlockSpec((1, D), lambda i, j: (0, 0)),                    # ln beta
            ],
            out_specs=pl.BlockSpec((block_b, D), lambda i, j: (i, 0)),
            scratch_shapes=[
                pltpu.VMEM((block_b, 1), jnp.float32),   # running max
                pltpu.VMEM((block_b, 1), jnp.float32),   # running denom
                pltpu.VMEM((block_b, D), jnp.float32),   # unnormalized pooled acc
            ],
        ),
        compiler_params=pltpu.CompilerParams(
            dimension_semantics=("parallel", "arbitrary"),
        ),
    )(
        x,                                          # native dtype, no wrapper cast
        w.astype(jnp.float32),
        b.reshape(1, 1).astype(jnp.float32),
        gamma.reshape(1, D).astype(jnp.float32),
        beta.reshape(1, D).astype(jnp.float32),
    )


# --------------------------- pure-JAX reference -------------------------------

def reference(x, w, b, gamma, beta, *, ln_eps=1e-5):
    xf = x.astype(jnp.float32)
    logits = jnp.einsum("bld,od->blo", xf, w.astype(jnp.float32)) + b.astype(jnp.float32)
    weights = jax.nn.softmax(logits, axis=-2)               # softmax over L
    pooled = jnp.sum(xf * weights, axis=-2)                 # (B, D)
    mean = jnp.mean(pooled, axis=-1, keepdims=True)
    var = jnp.mean((pooled - mean) ** 2, axis=-1, keepdims=True)
    return (pooled - mean) / jnp.sqrt(var + ln_eps) * gamma + beta


# ----------------------------------- main --------------------------------------

def init_params(key, input_dim, output_dim=1):
    kw, kb = jax.random.split(key)
    bound = 1.0 / math.sqrt(input_dim)
    w = jax.random.uniform(kw, (output_dim, input_dim), jnp.float32, -bound, bound)
    b = jax.random.uniform(kb, (output_dim,), jnp.float32, -bound, bound)
    gamma = jnp.ones((input_dim,), jnp.float32)
    beta = jnp.zeros((input_dim,), jnp.float32)
    return w, b, gamma, beta


if __name__ == "__main__":
    key = jax.random.PRNGKey(0)
    B, L, D = 16, 32, 128                     # D=128 keeps the (B, D) output lane-dense

    kx, kp = jax.random.split(key)
    # Native bf16 activations: the kernel DMAs bf16 and upcasts per tile in-kernel.
    x = jax.random.normal(kx, (B, L, D), jnp.float32).astype(jnp.bfloat16)
    w, b, gamma, beta = init_params(kp, D, output_dim=1)

    # Small explicit blocks so the demo exercises both grid axes:
    # batch pipelining (2 B-blocks) and online-softmax streaming over L (4 L-blocks).
    out = softpool_forward(x, w, b, gamma, beta, block_b=8, block_l=8)
    out = jax.block_until_ready(out)

    ref = reference(x, w, b, gamma, beta)
    assert out.shape == (B, D)
    err = float(jnp.max(jnp.abs(out.astype(jnp.float32) - ref)))
    assert err < 5e-2, f"mismatch vs JAX reference: {err}"   # bf16 output rounding + approx recip

    print("KERNEL_OK")
</pallas_src>

<mosaic_0001>
module attributes {stable_mosaic.version = 11 : i64} {
  func.func @_softpool_kernel(%arg0: i32, %arg1: i32, %arg2: memref<8x8x128xbf16, #tpu.memory_space<vmem>>, %arg3: memref<1x128xf32, #tpu.memory_space<vmem>>, %arg4: memref<1x1xf32, #tpu.memory_space<vmem>>, %arg5: memref<1x128xf32, #tpu.memory_space<vmem>>, %arg6: memref<1x128xf32, #tpu.memory_space<vmem>>, %arg7: memref<8x128xbf16, #tpu.memory_space<vmem>>, %arg8: memref<8x1xf32, #tpu.memory_space<vmem>>, %arg9: memref<8x1xf32, #tpu.memory_space<vmem>>, %arg10: memref<8x128xf32, #tpu.memory_space<vmem>>) attributes {dimension_semantics = [#tpu.dimension_semantics<parallel>, #tpu.dimension_semantics<arbitrary>], iteration_bounds = array<i64: 2, 4>, scalar_prefetch = 0 : i64, scratch_operands = 3 : i64, tpu.core_type = #tpu.core_type<tc>, window_params = [{transform_indices = @transform_0, window_bounds = array<i64: 8, 8, 128>}, {pipeline_mode = #tpu.pipeline_mode<synchronous>, transform_indices = @transform_1, window_bounds = array<i64: 1, 128>}, {pipeline_mode = #tpu.pipeline_mode<synchronous>, transform_indices = @transform_2, window_bounds = array<i64: 1, 1>}, {pipeline_mode = #tpu.pipeline_mode<synchronous>, transform_indices = @transform_3, window_bounds = array<i64: 1, 128>}, {pipeline_mode = #tpu.pipeline_mode<synchronous>, transform_indices = @transform_4, window_bounds = array<i64: 1, 128>}, {transform_indices = @transform_5, window_bounds = array<i64: 8, 128>}]} {
    %c0_i32 = arith.constant 0 : i32
    %0 = arith.cmpi eq, %arg1, %c0_i32 : i32
    %1 = arith.extui %0 : i1 to i32
    %c0_i32_0 = arith.constant 0 : i32
    %2 = arith.cmpi ne, %1, %c0_i32_0 : i32
    scf.if %2 {
      %cst_25 = arith.constant 0xFF800000 : f32
      %42 = vector.broadcast %cst_25 : f32 to vector<8x1xf32>
      %c0_26 = arith.constant 0 : index
      %c0_27 = arith.constant 0 : index
      %43 = vector.load %arg8[%c0_26, %c0_27] : memref<8x1xf32, #tpu.memory_space<vmem>>, vector<8x1xf32>
      tpu.vector_store %arg8[%c0_26, %c0_27], %42 {strides = array<i32>} : memref<8x1xf32, #tpu.memory_space<vmem>>, vector<8x1xf32>,
      %cst_28 = arith.constant 0.000000e+00 : f32
      %44 = vector.broadcast %cst_28 : f32 to vector<8x1xf32>
      %c0_29 = arith.constant 0 : index
      %c0_30 = arith.constant 0 : index
      %45 = vector.load %arg9[%c0_29, %c0_30] : memref<8x1xf32, #tpu.memory_space<vmem>>, vector<8x1xf32>
      tpu.vector_store %arg9[%c0_29, %c0_30], %44 {strides = array<i32>} : memref<8x1xf32, #tpu.memory_space<vmem>>, vector<8x1xf32>,
      %cst_31 = arith.constant 0.000000e+00 : f32
      %46 = vector.broadcast %cst_31 : f32 to vector<8x128xf32>
      %c0_32 = arith.constant 0 : index
      %c0_33 = arith.constant 0 : index
      %47 = vector.load %arg10[%c0_32, %c0_33] : memref<8x128xf32, #tpu.memory_space<vmem>>, vector<8x128xf32>
      tpu.vector_store %arg10[%c0_32, %c0_33], %46 {strides = array<i32>} : memref<8x128xf32, #tpu.memory_space<vmem>>, vector<8x128xf32>,
    } else {
    }
    %c0 = arith.constant 0 : index
    %c0_1 = arith.constant 0 : index
    %c0_2 = arith.constant 0 : index
    %3 = vector.load %arg2[%c0, %c0_1, %c0_2] : memref<8x8x128xbf16, #tpu.memory_space<vmem>>, vector<8x8x128xbf16>
    %4 = arith.extf %3 : vector<8x8x128xbf16> to vector<8x8x128xf32>
    %c0_3 = arith.constant 0 : index
    %c0_4 = arith.constant 0 : index
    %5 = vector.load %arg3[%c0_3, %c0_4] : memref<1x128xf32, #tpu.memory_space<vmem>>, vector<1x128xf32>
    %c0_5 = arith.constant 0 : index
    %c0_6 = arith.constant 0 : index
    %6 = vector.load %arg4[%c0_5, %c0_6] : memref<1x1xf32, #tpu.memory_space<vmem>>, vector<1x1xf32>
    %7 = vector.shape_cast %5 : vector<1x128xf32> to vector<1x1x128xf32>
    %8 = vector.broadcast %7 : vector<1x1x128xf32> to vector<8x8x128xf32>
    %9 = arith.mulf %4, %8 : vector<8x8x128xf32>
    %cst = arith.constant dense<0.000000e+00> : vector<8x8xf32>
    %10 = vector.multi_reduction <add>, %9, %cst [2] : vector<8x8x128xf32> to vector<8x8xf32>
    %11 = vector.shape_cast %10 : vector<8x8xf32> to vector<8x8x1xf32>
    %12 = vector.shape_cast %6 : vector<1x1xf32> to vector<1x1x1xf32>
    %13 = vector.broadcast %12 : vector<1x1x1xf32> to vector<8x8x1xf32>
    %14 = arith.addf %11, %13 : vector<8x8x1xf32>
    %cst_7 = arith.constant dense<0xFF800000> : vector<8x1xf32>
    %15 = vector.multi_reduction <maximumf>, %14, %cst_7 [1] : vector<8x8x1xf32> to vector<8x1xf32>
    %c0_8 = arith.constant 0 : index
    %c0_9 = arith.constant 0 : index
    %16 = vector.load %arg8[%c0_8, %c0_9] : memref<8x1xf32, #tpu.memory_space<vmem>>, vector<8x1xf32>
    %17 = arith.maximumf %16, %15 : vector<8x1xf32>
    %c0_10 = arith.constant 0 : index
    %c0_11 = arith.constant 0 : index
    %18 = vector.load %arg8[%c0_10, %c0_11] : memref<8x1xf32, #tpu.memory_space<vmem>>, vector<8x1xf32>
    %19 = arith.subf %18, %17 : vector<8x1xf32>
    %20 = math.exp %19 : vector<8x1xf32>
    %21 = vector.shape_cast %17 : vector<8x1xf32> to vector<8x1x1xf32>
    %22 = vector.broadcast %21 : vector<8x1x1xf32> to vector<8x8x1xf32>
    %23 = arith.subf %14, %22 : vector<8x8x1xf32>
    %24 = math.exp %23 : vector<8x8x1xf32>
    %c0_12 = arith.constant 0 : index
    %c0_13 = arith.constant 0 : index
    %25 = vector.load %arg9[%c0_12, %c0_13] : memref<8x1xf32, #tpu.memory_space<vmem>>, vector<8x1xf32>
    %26 = arith.mulf %20, %25 : vector<8x1xf32>
    %cst_14 = arith.constant dense<0.000000e+00> : vector<8x1xf32>
    %27 = vector.multi_reduction <add>, %24, %cst_14 [1] : vector<8x8x1xf32> to vector<8x1xf32>
    %28 = arith.addf %26, %27 : vector<8x1xf32>
    %c0_15 = arith.constant 0 : index
    %c0_16 = arith.constant 0 : index
    %29 = vector.load %arg9[%c0_15, %c0_16] : memref<8x1xf32, #tpu.memory_space<vmem>>, vector<8x1xf32>
    tpu.vector_store %arg9[%c0_15, %c0_16], %28 {strides = array<i32>} : memref<8x1xf32, #tpu.memory_space<vmem>>, vector<8x1xf32>,
    %c0_17 = arith.constant 0 : index
    %c0_18 = arith.constant 0 : index
    %30 = vector.load %arg10[%c0_17, %c0_18] : memref<8x128xf32, #tpu.memory_space<vmem>>, vector<8x128xf32>
    %31 = vector.broadcast %20 : vector<8x1xf32> to vector<8x128xf32>
    %32 = arith.mulf %31, %30 : vector<8x128xf32>
    %33 = vector.broadcast %24 : vector<8x8x1xf32> to vector<8x8x128xf32>
    %34 = arith.mulf %4, %33 : vector<8x8x128xf32>
    %cst_19 = arith.constant dense<0.000000e+00> : vector<8x128xf32>
    %35 = vector.multi_reduction <add>, %34, %cst_19 [1] : vector<8x8x128xf32> to vector<8x128xf32>
    %36 = arith.addf %32, %35 : vector<8x128xf32>
    %c0_20 = arith.constant 0 : index
    %c0_21 = arith.constant 0 : index
    %37 = vector.load %arg10[%c0_20, %c0_21] : memref<8x128xf32, #tpu.memory_space<vmem>>, vector<8x128xf32>
    tpu.vector_store %arg10[%c0_20, %c0_21], %36 {strides = array<i32>} : memref<8x128xf32, #tpu.memory_space<vmem>>, vector<8x128xf32>,
    %c0_22 = arith.constant 0 : index
    %c0_23 = arith.constant 0 : index
    %38 = vector.load %arg8[%c0_22, %c0_23] : memref<8x1xf32, #tpu.memory_space<vmem>>, vector<8x1xf32>
    tpu.vector_store %arg8[%c0_22, %c0_23], %17 {strides = array<i32>} : memref<8x1xf32, #tpu.memory_space<vmem>>, vector<8x1xf32>,
    %c3_i32 = arith.constant 3 : i32
    %39 = arith.cmpi eq, %arg1, %c3_i32 : i32
    %40 = arith.extui %39 : i1 to i32
    %c0_i32_24 = arith.constant 0 : i32
    %41 = arith.cmpi ne, %40, %c0_i32_24 : i32
    scf.if %41 {
      %c0_25 = arith.constant 0 : index
      %c0_26 = arith.constant 0 : index
      %42 = vector.load %arg10[%c0_25, %c0_26] : memref<8x128xf32, #tpu.memory_space<vmem>>, vector<8x128xf32>
      %c0_27 = arith.constant 0 : index
      %c0_28 = arith.constant 0 : index
      %43 = vector.load %arg9[%c0_27, %c0_28] : memref<8x1xf32, #tpu.memory_space<vmem>>, vector<8x1xf32>
      %44 = tpu.reciprocal %43 {approx = true} : vector<8x1xf32> -> vector<8x1xf32>
      %45 = vector.broadcast %44 : vector<8x1xf32> to vector<8x128xf32>
      %46 = arith.mulf %42, %45 : vector<8x128xf32>
      %cst_29 = arith.constant dense<0.000000e+00> : vector<8xf32>
      %47 = vector.multi_reduction <add>, %46, %cst_29 [1] : vector<8x128xf32> to vector<8xf32>
      %48 = vector.shape_cast %47 : vector<8xf32> to vector<8x1xf32>
      %cst_30 = arith.constant 1.280000e+02 : f32
      %49 = vector.broadcast %cst_30 : f32 to vector<8x1xf32>
      %50 = arith.divf %48, %49 : vector<8x1xf32>
      %51 = vector.broadcast %50 : vector<8x1xf32> to vector<8x128xf32>
      %52 = arith.subf %46, %51 : vector<8x128xf32>
      %53 = arith.mulf %52, %52 : vector<8x128xf32>
      %cst_31 = arith.constant dense<0.000000e+00> : vector<8xf32>
      %54 = vector.multi_reduction <add>, %53, %cst_31 [1] : vector<8x128xf32> to vector<8xf32>
      %55 = vector.shape_cast %54 : vector<8xf32> to vector<8x1xf32>
      %cst_32 = arith.constant 1.280000e+02 : f32
      %56 = vector.broadcast %cst_32 : f32 to vector<8x1xf32>
      %57 = arith.divf %55, %56 : vector<8x1xf32>
      %cst_33 = arith.constant 9.99999974E-6 : f32
      %58 = vector.broadcast %cst_33 : f32 to vector<8x1xf32>
      %59 = arith.addf %57, %58 : vector<8x1xf32>
      %60 = math.rsqrt %59 : vector<8x1xf32>
      %61 = vector.broadcast %60 : vector<8x1xf32> to vector<8x128xf32>
      %62 = arith.mulf %52, %61 : vector<8x128xf32>
      %c0_34 = arith.constant 0 : index
      %c0_35 = arith.constant 0 : index
      %63 = vector.load %arg5[%c0_34, %c0_35] : memref<1x128xf32, #tpu.memory_space<vmem>>, vector<1x128xf32>
      %c0_36 = arith.constant 0 : index
      %c0_37 = arith.constant 0 : index
      %64 = vector.load %arg6[%c0_36, %c0_37] : memref<1x128xf32, #tpu.memory_space<vmem>>, vector<1x128xf32>
      %65 = vector.broadcast %63 : vector<1x128xf32> to vector<8x128xf32>
      %66 = arith.mulf %62, %65 : vector<8x128xf32>
      %67 = vector.broadcast %64 : vector<1x128xf32> to vector<8x128xf32>
      %68 = arith.addf %66, %67 : vector<8x128xf32>
      %69 = arith.truncf %68 : vector<8x128xf32> to vector<8x128xbf16>
      %c0_38 = arith.constant 0 : index
      %c0_39 = arith.constant 0 : index
      %70 = vector.load %arg7[%c0_38, %c0_39] : memref<8x128xbf16, #tpu.memory_space<vmem>>, vector<8x128xbf16>
      tpu.vector_store %arg7[%c0_38, %c0_39], %69 {strides = array<i32>} : memref<8x128xbf16, #tpu.memory_space<vmem>>, vector<8x128xbf16>,
    } else {
    }
    return
  }
  func.func @transform_0(%arg0: i32, %arg1: i32) -> (i32, i32, i32) {
    %c0_i32 = arith.constant 0 : i32
    %c0_i32_0 = arith.constant 0 : i32
    return %arg0, %arg1, %c0_i32 : i32, i32, i32
  }
  func.func @transform_1(%arg0: i32, %arg1: i32) -> (i32, i32) {
    %c0_i32 = arith.constant 0 : i32
    %c0_i32_0 = arith.constant 0 : i32
    %c0_i32_1 = arith.constant 0 : i32
    return %c0_i32, %c0_i32_0 : i32, i32
  }
  func.func @transform_2(%arg0: i32, %arg1: i32) -> (i32, i32) {
    %c0_i32 = arith.constant 0 : i32
    %c0_i32_0 = arith.constant 0 : i32
    %c0_i32_1 = arith.constant 0 : i32
    return %c0_i32, %c0_i32_0 : i32, i32
  }
  func.func @transform_3(%arg0: i32, %arg1: i32) -> (i32, i32) {
    %c0_i32 = arith.constant 0 : i32
    %c0_i32_0 = arith.constant 0 : i32
    %c0_i32_1 = arith.constant 0 : i32
    return %c0_i32, %c0_i32_0 : i32, i32
  }
  func.func @transform_4(%arg0: i32, %arg1: i32) -> (i32, i32) {
    %c0_i32 = arith.constant 0 : i32
    %c0_i32_0 = arith.constant 0 : i32
    %c0_i32_1 = arith.constant 0 : i32
    return %c0_i32, %c0_i32_0 : i32, i32
  }
  func.func @transform_5(%arg0: i32, %arg1: i32) -> (i32, i32) {
    %c0_i32 = arith.constant 0 : i32
    %c0_i32_0 = arith.constant 0 : i32
    return %arg0, %c0_i32 : i32, i32
  }
}

</mosaic_0001>

<llo_original>
// kernel: tpu_custom_call.1
$region0: #{tpu_custom_call.1}
  #allocation0 [shape = 'u32[]', space=smem, size = 0x4, offset = 0x4, fixed_abs, tag = 'smem constant byte address 0x4 - core index']
  #allocation1 [shape = 'u32[144,128]{1,0:T(1,128)}', space=vmem, size = 0x12000, scoped, tag = 'internal scratch']
  #allocation2 [shape = 'f32[8,1]{1,0:T(8,128)}', space=vmem, size = 0x1000, scoped, tag = 'scratch operand']
  #allocation3 [shape = 'f32[8,1]{1,0:T(8,128)}', space=vmem, size = 0x1000, scoped, tag = 'scratch operand']
  #allocation4 [shape = 'f32[8,128]{1,0:T(8,128)}', space=vmem, size = 0x1000, scoped, tag = 'scratch operand']
  #allocation5 [shape = 'f32[1,1]{1,0:T(1,128)S(1)}', space=vmem, size = 0x200, scoped, tag = 'scoped memory for tpu_custom_call.1']
  %s0 = inlined_call_operand.hbm [shape: bf16[16,32,128], index: 0, kind: input, shape index: {}]
  %s1 = inlined_call_operand.vmem [shape: f32[1,128], index: 1, kind: input, shape index: {}]
  %s2 = inlined_call_operand.<no memory space> [shape: f32[1,1], index: 2, kind: input, shape index: {}]
  %s3 = inlined_call_operand.vmem [shape: f32[1,128], index: 3, kind: input, shape index: {}]
  %s4 = inlined_call_operand.vmem [shape: f32[1,128], index: 4, kind: input, shape index: {}]
  %s5 = inlined_call_operand.hbm [shape: bf16[16,128], index: 5, kind: output, shape index: {}]
  %s6 = sld [smem:[#allocation0]]
  $region65: #{tpu_custom_call.1} parent=0
    _
  %s8 = ssub.s32 1, %s6
  %s9 = scalar_select 0, %s8, %s6
  %v10 = vstv %s2
  %11 = vst [vmem:[#allocation5] sm:$0x1] %v10
  $region1: #{tpu_custom_call.1} parent=0
    #allocation6 [shape = 'u8[32768]{0}', space=vmem, size = 0x8000, scoped, tag = 'input window, operand 0']
    #allocation7 [shape = 's32[2]{0}', space=sflag, size = 0x8, scoped, tag = 'scoped memory for tpu_custom_call.1']
    #allocation8 [shape = 's32[2]{0}', space=sflag, size = 0x8, scoped, tag = 'scoped memory for tpu_custom_call.1']
    #allocation9 [shape = 'u8[4096]{0}', space=vmem, size = 0x1000, scoped, tag = 'output window, operand 0']
    %12 = vsyncpa [#allocation7], 0
    %s13 = scalar_lea.sflag [#allocation7], 1
    %14 = vsyncpa %s13, 0
    %15 = vsyncpa [#allocation8], 0
    %s16 = scalar_lea.sflag [#allocation8], 1
    %17 = vsyncpa %s16, 0
    loop: start=0, step=1, limit=10
    $region2: #{tpu_custom_call.1} parent=1 // loop_pre_header
      _
    $region3: #{tpu_custom_call.1} parent=1 // loop_header
      %s19 = sphi 0, %s23
      %p20 = scmp.ge.s32.totalorder %s19, 10
      %s26 = sphi 0, %s38
      %s27 = sphi 0, %s34
      %s28 = sphi 0, %s26
      %s29 = sphi 0, %s27
      %s30 = sphi 0, %s28
      %s31 = sphi 0, %s29
      %s43 = sphi 0, %s45
      %s46 = sphi 0, %s43
      %s47 = sphi 0, %s46
      %s63 = sphi 0, %s47
      %s67 = sphi 0, %s67
      %s69 = sphi 0, %s67
      %s70 = sphi 0, %s69
      %s84 = sphi 0, %s70
      %s88 = sphi 0, %s88
      %s90 = sphi 0, %s88
      %s91 = sphi 0, %s90
      %s105 = sphi 0, %s91
      %s109 = sphi 0, %s109
      %s111 = sphi 0, %s109
      %s112 = sphi 0, %s111
      %s126 = sphi 0, %s112
      %s130 = sphi 0, %s130
      %s132 = sphi 0, %s130
      %s133 = sphi 0, %s132
      %s147 = sphi 0, %s133
      %s153 = sphi 0, %s155
      %s156 = sphi 0, %s153
      %s157 = sphi 0, %s156
      %s173 = sphi 0, %s157
    $region4: #{tpu_custom_call.1} parent=1 // loop_header_branch
      %22 = sbr.rel (%p20) target = $region8
    $region5: #{tpu_custom_call.1} parent=1 // loop_body
      %s24 = ssub.s32 %s19, 1
      %s25 = ssub.s32 %s19, 2
      %s32 = sadd.s32 1, %s27
      %p33 = scmp.ge.s32.totalorder %s32, 4
      %s34 = scalar_select %p33, 0, %s32
      %s35 = sadd.s32 1, %s26
      %s36 = scalar_select %p33, %s35, %s26
      %p37 = scmp.ge.s32.totalorder %s36, 2
      %s38 = scalar_select %p37, 0, %s36
      %s39 = ssub.s32 %s26, %s38
      %s40 = ssub.s32 %s27, %s34
      %s41 = sor.u32 %s39, %s40
      %p42 = scmp.eq.s32.totalorder %s41, 0
      %s44 = sadd.s32 %s43, 1
      %s45 = scalar_select %p42, %s43, %s44
      %p48 = pneg %p42
      %p49 = scmp.eq.s32.totalorder %s19, 7
      %p50 = por %p48, %p49
      %p51 = scmp.ne.s32.totalorder %s43, %s46
      %p52 = scmp.eq.s32.totalorder %s19, 0
      %p53 = por %p51, %p52
      %p54 = scmp.ne.s32.totalorder %s43, %s46
      %p55 = scmp.eq.s32.totalorder %s24, 7
      %p56 = por %p54, %p55
      %p57 = scmp.ne.s32.totalorder %s46, %s47
      %p58 = scmp.eq.s32.totalorder %s24, 0
      %p59 = por %p57, %p58
      %p60 = scmp.ne.s32.totalorder %s46, %s47
      %p61 = scmp.eq.s32.totalorder %s25, 7
      %p62 = por %p60, %p61
      %p64 = scmp.ne.s32.totalorder %s47, %s63
      %p65 = scmp.eq.s32.totalorder %s25, 0
      %p66 = por %p64, %p65
      %s68 = sadd.s32 %s67, 1
      %p71 = scmp.eq.s32.totalorder %s19, 7
      %p72 = scmp.ne.s32.totalorder %s67, %s69
      %p73 = scmp.eq.s32.totalorder %s19, 0
      %p74 = por %p72, %p73
      %p75 = scmp.ne.s32.totalorder %s67, %s69
      %p76 = scmp.eq.s32.totalorder %s24, 7
      %p77 = por %p75, %p76
      %p78 = scmp.ne.s32.totalorder %s69, %s70
      %p79 = scmp.eq.s32.totalorder %s24, 0
      %p80 = por %p78, %p79
      %p81 = scmp.ne.s32.totalorder %s69, %s70
      %p82 = scmp.eq.s32.totalorder %s25, 7
      %p83 = por %p81, %p82
      %p85 = scmp.ne.s32.totalorder %s70, %s84
      %p86 = scmp.eq.s32.totalorder %s25, 0
      %p87 = por %p85, %p86
      %s89 = sadd.s32 %s88, 1
      %p92 = scmp.eq.s32.totalorder %s19, 7
      %p93 = scmp.ne.s32.totalorder %s88, %s90
      %p94 = scmp.eq.s32.totalorder %s19, 0
      %p95 = por %p93, %p94
      %p96 = scmp.ne.s32.totalorder %s88, %s90
      %p97 = scmp.eq.s32.totalorder %s24, 7
      %p98 = por %p96, %p97
      %p99 = scmp.ne.s32.totalorder %s90, %s91
      %p100 = scmp.eq.s32.totalorder %s24, 0
      %p101 = por %p99, %p100
      %p102 = scmp.ne.s32.totalorder %s90, %s91
      %p103 = scmp.eq.s32.totalorder %s25, 7
      %p104 = por %p102, %p103
      %p106 = scmp.ne.s32.totalorder %s91, %s105
      %p107 = scmp.eq.s32.totalorder %s25, 0
      %p108 = por %p106, %p107
      %s110 = sadd.s32 %s109, 1
      %p113 = scmp.eq.s32.totalorder %s19, 7
      %p114 = scmp.ne.s32.totalorder %s109, %s111
      %p115 = scmp.eq.s32.totalorder %s19, 0
      %p116 = por %p114, %p115
      %p117 = scmp.ne.s32.totalorder %s109, %s111
      %p118 = scmp.eq.s32.totalorder %s24, 7
      %p119 = por %p117, %p118
      %p120 = scmp.ne.s32.totalorder %s111, %s112
      %p121 = scmp.eq.s32.totalorder %s24, 0
      %p122 = por %p120, %p121
      %p123 = scmp.ne.s32.totalorder %s111, %s112
      %p124 = scmp.eq.s32.totalorder %s25, 7
      %p125 = por %p123, %p124
      %p127 = scmp.ne.s32.totalorder %s112, %s126
      %p128 = scmp.eq.s32.totalorder %s25, 0
      %p129 = por %p127, %p128
      %s131 = sadd.s32 %s130, 1
      %p134 = scmp.eq.s32.totalorder %s19, 7
      %p135 = scmp.ne.s32.totalorder %s130, %s132
      %p136 = scmp.eq.s32.totalorder %s19, 0
      %p137 = por %p135, %p136
      %p138 = scmp.ne.s32.totalorder %s130, %s132
      %p139 = scmp.eq.s32.totalorder %s24, 7
      %p140 = por %p138, %p139
      %p141 = scmp.ne.s32.totalorder %s132, %s133
      %p142 = scmp.eq.s32.totalorder %s24, 0
      %p143 = por %p141, %p142
      %p144 = scmp.ne.s32.totalorder %s132, %s133
      %p145 = scmp.eq.s32.totalorder %s25, 7
      %p146 = por %p144, %p145
      %p148 = scmp.ne.s32.totalorder %s133, %s147
      %p149 = scmp.eq.s32.totalorder %s25, 0
      %p150 = por %p148, %p149
      %s151 = ssub.s32 %s26, %s38
      %p152 = scmp.eq.s32.totalorder %s151, 0
      %s154 = sadd.s32 %s153, 1
      %s155 = scalar_select %p152, %s153, %s154
      %p158 = pneg %p152
      %p159 = scmp.eq.s32.totalorder %s19, 7
      %p160 = por %p158, %p159
      %p161 = scmp.ne.s32.totalorder %s153, %s156
      %p162 = scmp.eq.s32.totalorder %s19, 0
      %p163 = por %p161, %p162
      %p164 = scmp.ne.s32.totalorder %s153, %s156
      %p165 = scmp.eq.s32.totalorder %s24, 7
      %p166 = por %p164, %p165
      %p167 = scmp.ne.s32.totalorder %s156, %s157
      %p168 = scmp.eq.s32.totalorder %s24, 0
      %p169 = por %p167, %p168
      %p170 = scmp.ne.s32.totalorder %s156, %s157
      %p171 = scmp.eq.s32.totalorder %s25, 7
      %p172 = por %p170, %p171
      %p174 = scmp.ne.s32.totalorder %s157, %s173
      %p175 = scmp.eq.s32.totalorder %s25, 0
      %p176 = por %p174, %p175
      %p177 = scmp.le.s32.totalorder 1, %s19
      %p178 = scmp.lt.s32.totalorder %s19, 9
      %p179 = pnand %p177, %p178
      %p180 = pneg %p179
      // Predicated region
      $region9: #{tpu_custom_call.1} parent=5 // pred_check
        _
      $region10: #{tpu_custom_call.1} parent=5 // pred_check_branch
        %182 = sbr.rel (%p179) target = $region12
      $region11: #{tpu_custom_call.1} parent=5 // pred_region
        %s183 = ssub.s32 %s19, 1
        // Predicated region
        $region13: #{tpu_custom_call.1} parent=11 // pred_check
          %p184 = pneg %p80
        $region14: #{tpu_custom_call.1} parent=11 // pred_check_branch
          %186 = sbr.rel (%p184) target = $region16
        $region15: #{tpu_custom_call.1} parent=11 // pred_region
          _
        $region16: #{tpu_custom_call.1} parent=11 // pred_fallthru
          _
        // Predicated region
        $region17: #{tpu_custom_call.1} parent=11 // pred_check
          %p187 = pneg %p101
        $region18: #{tpu_custom_call.1} parent=11 // pred_check_branch
          %189 = sbr.rel (%p187) target = $region20
        $region19: #{tpu_custom_call.1} parent=11 // pred_region
          _
        $region20: #{tpu_custom_call.1} parent=11 // pred_fallthru
          _
        // Predicated region
        $region21: #{tpu_custom_call.1} parent=11 // pred_check
          %p190 = pneg %p122
        $region22: #{tpu_custom_call.1} parent=11 // pred_check_branch
          %192 = sbr.rel (%p190) target = $region24
        $region23: #{tpu_custom_call.1} parent=11 // pred_region
          _
        $region24: #{tpu_custom_call.1} parent=11 // pred_fallthru
          _
        // Predicated region
        $region25: #{tpu_custom_call.1} parent=11 // pred_check
          %p193 = pneg %p143
        $region26: #{tpu_custom_call.1} parent=11 // pred_check_branch
          %195 = sbr.rel (%p193) target = $region28
        $region27: #{tpu_custom_call.1} parent=11 // pred_region
          _
        $region28: #{tpu_custom_call.1} parent=11 // pred_fallthru
          _
      $region12: #{tpu_custom_call.1} parent=5 // pred_fallthru
        _
      %p196 = scmp.lt.s32.totalorder %s19, 8
      // Predicated region
      $region29: #{tpu_custom_call.1} parent=5 // pred_check
        %p197 = pneg %p196
      $region30: #{tpu_custom_call.1} parent=5 // pred_check_branch
        %199 = sbr.rel (%p197) target = $region32
      $region31: #{tpu_custom_call.1} parent=5 // pred_region
        // Predicated region
        $region33: #{tpu_custom_call.1} parent=31 // pred_check
          %p200 = pneg %p53
        $region34: #{tpu_custom_call.1} parent=31 // pred_check_branch
          %202 = sbr.rel (%p200) target = $region36
        $region35: #{tpu_custom_call.1} parent=31 // pred_region
          %s203 = sand.u32 %s43, 1
          %s204 = scalar_lea.sflag [#allocation7], %s203
          %s205 = sand.u32 %s43, 1
          %s206 = smul.addr %s205, 32
          %s207 = scalar_lea.vmem [#allocation6], %s206
          %s208 = smul.u32 8, %s26
          %s210 = ssub.s32 512, 512
          %211 = vsyncadd %s204, %s210
          %s212 = smul.addr %s208, 4
          %s213 = sadd.s32 %s27, %s212
          %s214 = smul.addr %s213, 64
          %s215 = scalar_lea.hbm %s0, %s214
          %s216 = sshll.u32 %s207, 4
          %s217 = int_to_ptr.vmem [resolvable:$true] %s216
          %222 = dma.hbm_to_vmem [thread:$0]  %s215, 512, %s217, %s204, 256, 64, 4
        $region36: #{tpu_custom_call.1} parent=31 // pred_fallthru
          _
      $region32: #{tpu_custom_call.1} parent=5 // pred_fallthru
        _
      %p223 = scmp.le.s32.totalorder 1, %s19
      %p224 = scmp.lt.s32.totalorder %s19, 9
      %p225 = pnand %p223, %p224
      %p226 = pneg %p225
      // Predicated region
      $region37: #{tpu_custom_call.1} parent=5 // pred_check
        _
      $region38: #{tpu_custom_call.1} parent=5 // pred_check_branch
        %228 = sbr.rel (%p225) target = $region40
      $region39: #{tpu_custom_call.1} parent=5 // pred_region
        %s229 = ssub.s32 %s19, 1
        %s230 = sand.u32 %s46, 1
        %s231 = scalar_lea.sflag [#allocation7], %s230
        %s232 = sand.u32 %s46, 1
        %s233 = smul.addr %s232, 32
        %s234 = scalar_lea.vmem [#allocation6], %s233
        // Predicated region
        $region41: #{tpu_custom_call.1} parent=39 // pred_check
          %p235 = pneg %p59
        $region42: #{tpu_custom_call.1} parent=39 // pred_check_branch
          %237 = sbr.rel (%p235) target = $region44
        $region43: #{tpu_custom_call.1} parent=39 // pred_region
          %238 = dma.done %s231, 512
        $region44: #{tpu_custom_call.1} parent=39 // pred_fallthru
          _
        %s239 = sand.u32 %s46, 1
        %s240 = scalar_lea.sflag [#allocation7], %s239
        %s241 = sand.u32 %s46, 1
        %s242 = smul.addr %s241, 32
        %s243 = scalar_lea.vmem [#allocation6], %s242
        %p244 = pneg %p59
        %p245 = pneg %p56
        %p246 = pneg %p80
        %p247 = pneg %p77
        %p248 = pneg %p101
        %p249 = pneg %p98
        %p250 = pneg %p122
        %p251 = pneg %p119
        %p252 = pneg %p143
        %p253 = pneg %p140
        %p254 = pneg %p169
        %p255 = pneg %p166
        %s256 = sand.u32 %s156, 1
        %s257 = scalar_lea.sflag [#allocation8], %s256
        %s258 = sand.u32 %s156, 1
        %s259 = smul.addr %s258, 4
        %s260 = scalar_lea.vmem [#allocation9], %s259
        %s261 = smul.u32 8, %s28
        %p262 = scmp.eq.s32.totalorder %s29, 0
        // Predicated region
        $region45: #{tpu_custom_call.1} parent=39 // pred_check
          %p263 = pneg %p262
        $region46: #{tpu_custom_call.1} parent=39 // pred_check_branch
          %265 = sbr.rel (%p263) target = $region48
        $region47: #{tpu_custom_call.1} parent=39 // pred_region
          %vm266 = vcmask 7168
          %267 = vst.msk [vmem:[#allocation2] sm:$0xff] %vm266, -inf
          %268 = vst.msk [vmem:[#allocation3] sm:$0xff] %vm266, 0.0
          %269 = vst [vmem:[#allocation4] sm:$0xff] 0.0
        $region48: #{tpu_custom_call.1} parent=39 // pred_fallthru
          _
        %v270 = vld [vmem:[%s234] sm:$0xf]
        %v271 = vld [vmem:[%s234 + $0x4] sm:$0xf]
        %v272 = vld [vmem:[%s234 + $0x8] sm:$0xf]
        %v273 = vld [vmem:[%s234 + $0xc] sm:$0xf]
        %v274 = vld [vmem:[%s234 + $0x10] sm:$0xf]
        %v275 = vld [vmem:[%s234 + $0x14] sm:$0xf]
        %v276 = vld [vmem:[%s234 + $0x18] sm:$0xf]
        %v277 = vld [vmem:[%s234 + $0x1c] sm:$0xf]
        %v278 = vunpack.c.l.bf16 %v270
        %v279 = vunpack.c.l.bf16 %v271
        %v280 = vunpack.c.l.bf16 %v272
        %v281 = vunpack.c.l.bf16 %v273
        %v282 = vunpack.c.l.bf16 %v274
        %v283 = vunpack.c.l.bf16 %v275
        %v284 = vunpack.c.l.bf16 %v276
        %v285 = vunpack.c.l.bf16 %v277
        %v286 = vld [vmem:[%s1] sm:$0x1]
        %v287 = vld [vmem:[#allocation5] sm:$0x1]
        %v289 = vlaneseq
        %v290 = vshrl.u32 %v289, 7
        %v291 = vsub.s32 0, %v290
        %v292 = vrot.slane %v286, %v291
        %v294 = vmul.f32 %v278, %v292
        %v295 = vmul.f32 %v279, %v292
        %v296 = vmul.f32 %v280, %v292
        %v297 = vmul.f32 %v281, %v292
        %v298 = vmul.f32 %v282, %v292
        %v299 = vmul.f32 %v283, %v292
        %v300 = vmul.f32 %v284, %v292
        %v301 = vmul.f32 %v285, %v292
        %302 = vadd.xlane.f32.xlu0 %v294
        %v303 = vpop.xlane.xlu0 %302
        %304 = vadd.xlane.f32.xlu0 %v295
        %v305 = vpop.xlane.xlu0 %304
        %306 = vadd.xlane.f32.xlu0 %v296
        %v307 = vpop.xlane.xlu0 %306
        %308 = vadd.xlane.f32.xlu0 %v297
        %v309 = vpop.xlane.xlu0 %308
        %310 = vadd.xlane.f32.xlu0 %v298
        %v311 = vpop.xlane.xlu0 %310
        %312 = vadd.xlane.f32.xlu0 %v299
        %v313 = vpop.xlane.xlu0 %312
        %314 = vadd.xlane.f32.xlu0 %v300
        %v315 = vpop.xlane.xlu0 %314
        %316 = vadd.xlane.f32.xlu0 %v301
        %v317 = vpop.xlane.xlu0 %316
        %v319 = vlaneseq
        %v320 = vshrl.u32 %v319, 7
        %v321 = vsub.s32 0, %v320
        %v322 = vrot.slane %v287, %v321
        %v324 = vadd.f32 %v303, %v322
        %v325 = vadd.f32 %v305, %v322
        %v326 = vadd.f32 %v307, %v322
        %v327 = vadd.f32 %v309, %v322
        %v328 = vadd.f32 %v311, %v322
        %v329 = vadd.f32 %v313, %v322
        %v330 = vadd.f32 %v315, %v322
        %v331 = vadd.f32 %v317, %v322
        %vm332 = vcmask 7168
        %v333 = vsel %vm332, %v324, -inf
        %v334 = vrot.slane %v333, 4
        %v335 = vmax.f32 %v333, %v334
        %v336 = vrot.slane %v335, 2
        %v337 = vmax.f32 %v335, %v336
        %v338 = vrot.slane %v337, 1
        %v339 = vmax.f32 %v337, %v338
        %v340 = vsel %vm332, %v325, -inf
        %v341 = vrot.slane %v340, 4
        %v342 = vmax.f32 %v340, %v341
        %v343 = vrot.slane %v342, 2
        %v344 = vmax.f32 %v342, %v343
        %v345 = vrot.slane %v344, 1
        %v346 = vmax.f32 %v344, %v345
        %v347 = vsel %vm332, %v326, -inf
        %v348 = vrot.slane %v347, 4
        %v349 = vmax.f32 %v347, %v348
        %v350 = vrot.slane %v349, 2
        %v351 = vmax.f32 %v349, %v350
        %v352 = vrot.slane %v351, 1
        %v353 = vmax.f32 %v351, %v352
        %v354 = vsel %vm332, %v327, -inf
        %v355 = vrot.slane %v354, 4
        %v356 = vmax.f32 %v354, %v355
        %v357 = vrot.slane %v356, 2
        %v358 = vmax.f32 %v356, %v357
        %v359 = vrot.slane %v358, 1
        %v360 = vmax.f32 %v358, %v359
        %v361 = vsel %vm332, %v328, -inf
        %v362 = vrot.slane %v361, 4
        %v363 = vmax.f32 %v361, %v362
        %v364 = vrot.slane %v363, 2
        %v365 = vmax.f32 %v363, %v364
        %v366 = vrot.slane %v365, 1
        %v367 = vmax.f32 %v365, %v366
        %v368 = vsel %vm332, %v329, -inf
        %v369 = vrot.slane %v368, 4
        %v370 = vmax.f32 %v368, %v369
        %v371 = vrot.slane %v370, 2
        %v372 = vmax.f32 %v370, %v371
        %v373 = vrot.slane %v372, 1
        %v374 = vmax.f32 %v372, %v373
        %v375 = vsel %vm332, %v330, -inf
        %v376 = vrot.slane %v375, 4
        %v377 = vmax.f32 %v375, %v376
        %v378 = vrot.slane %v377, 2
        %v379 = vmax.f32 %v377, %v378
        %v380 = vrot.slane %v379, 1
        %v381 = vmax.f32 %v379, %v380
        %v382 = vsel %vm332, %v331, -inf
        %v383 = vrot.slane %v382, 4
        %v384 = vmax.f32 %v382, %v383
        %v385 = vrot.slane %v384, 2
        %v386 = vmax.f32 %v384, %v385
        %v387 = vrot.slane %v386, 1
        %v388 = vmax.f32 %v386, %v387
        %v389 = vld [vmem:[#allocation2] sm:$0xff]
        %vm398 = vcmask 1041409
        %v399 = vsel %vm398, %v346, %v339
        %vm400 = vcmask 1042434
        %v401 = vsel %vm400, %v353, %v399
        %vm402 = vcmask 1043459
        %v403 = vsel %vm402, %v360, %v401
        %vm404 = vcmask 1044484
        %v405 = vsel %vm404, %v367, %v403
        %vm406 = vcmask 1045509
        %v407 = vsel %vm406, %v374, %v405
        %vm408 = vcmask 1046534
        %v409 = vsel %vm408, %v381, %v407
        %vm410 = vcmask 1047559
        %v411 = vsel %vm410, %v388, %v409
        %v413 = vmax.f32 %v389, %v411
        %v414 = vsub.f32 %v389, %v413
        %v415 = vmul.f32 %v414, 1.442695
        %v416 = vpow.pop %v415
        %v418 = vcombine.high %v413, %v413
        %v420 = vunpack.c.l.s4 1966171168
        %v421 = vunpack.c.0.s8 %v420
        %v422 = vlaneseq
        %v423 = vshrl.u32 %v422, 7
        %v424 = vsub.s32 %v421, %v423
        %v425 = vrot.slane %v413, %v424
        %v427 = vunpack.c.l.s4 1966171168
        %v428 = vunpack.c.0.s8 %v427
        %v429 = vlaneseq
        %v430 = vshrl.u32 %v429, 7
        %v431 = vsub.s32 %v428, %v430
        %v432 = vrot.slane %v418, %v431
        %v433 = vcombine.high %v425, %v425
        %v434 = vcombine.high %v432, %v432
        %v436 = vunpack.c.l.s4 1966171168
        %v437 = vunpack.c.0.s8 %v436
        %v438 = vlaneseq
        %v439 = vshrl.u32 %v438, 7
        %v440 = vsub.s32 %v437, %v439
        %v441 = vrot.slane %v425, %v440
        %v443 = vunpack.c.l.s4 1966171168
        %v444 = vunpack.c.0.s8 %v443
        %v445 = vlaneseq
        %v446 = vshrl.u32 %v445, 7
        %v447 = vsub.s32 %v444, %v446
        %v448 = vrot.slane %v432, %v447
        %v450 = vunpack.c.l.s4 1966171168
        %v451 = vunpack.c.0.s8 %v450
        %v452 = vlaneseq
        %v453 = vshrl.u32 %v452, 7
        %v454 = vsub.s32 %v451, %v453
        %v455 = vrot.slane %v433, %v454
        %v457 = vunpack.c.l.s4 1966171168
        %v458 = vunpack.c.0.s8 %v457
        %v459 = vlaneseq
        %v460 = vshrl.u32 %v459, 7
        %v461 = vsub.s32 %v458, %v460
        %v462 = vrot.slane %v434, %v461
        %v463 = vcombine.high %v441, %v441
        %v464 = vcombine.high %v448, %v448
        %v465 = vcombine.high %v455, %v455
        %v466 = vcombine.high %v462, %v462
        %v467 = vlaneseq
        %v468 = vshrl.u32 %v467, 7
        %v469 = vsub.s32 0, %v468
        %v470 = vrot.slane %v441, %v469
        %v471 = vlaneseq
        %v472 = vshrl.u32 %v471, 7
        %v473 = vsub.s32 0, %v472
        %v474 = vrot.slane %v455, %v473
        %v475 = vlaneseq
        %v476 = vshrl.u32 %v475, 7
        %v477 = vsub.s32 0, %v476
        %v478 = vrot.slane %v463, %v477
        %v479 = vlaneseq
        %v480 = vshrl.u32 %v479, 7
        %v481 = vsub.s32 0, %v480
        %v482 = vrot.slane %v465, %v481
        %v483 = vlaneseq
        %v484 = vshrl.u32 %v483, 7
        %v485 = vsub.s32 0, %v484
        %v486 = vrot.slane %v448, %v485
        %v487 = vlaneseq
        %v488 = vshrl.u32 %v487, 7
        %v489 = vsub.s32 0, %v488
        %v490 = vrot.slane %v462, %v489
        %v491 = vlaneseq
        %v492 = vshrl.u32 %v491, 7
        %v493 = vsub.s32 0, %v492
        %v494 = vrot.slane %v464, %v493
        %v495 = vlaneseq
        %v496 = vshrl.u32 %v495, 7
        %v497 = vsub.s32 0, %v496
        %v498 = vrot.slane %v466, %v497
        %v507 = vsub.f32 %v324, %v470
        %v508 = vsub.f32 %v325, %v474
        %v509 = vsub.f32 %v326, %v478
        %v510 = vsub.f32 %v327, %v482
        %v511 = vsub.f32 %v328, %v486
        %v512 = vsub.f32 %v329, %v490
        %v513 = vsub.f32 %v330, %v494
        %v514 = vsub.f32 %v331, %v498
        %v515 = vmul.f32 %v507, 1.442695
        %v516 = vpow.pop %v515
        %v517 = vmul.f32 %v508, 1.442695
        %v518 = vpow.pop %v517
        %v519 = vmul.f32 %v509, 1.442695
        %v520 = vpow.pop %v519
        %v521 = vmul.f32 %v510, 1.442695
        %v522 = vpow.pop %v521
        %v523 = vmul.f32 %v511, 1.442695
        %v524 = vpow.pop %v523
        %v525 = vmul.f32 %v512, 1.442695
        %v526 = vpow.pop %v525
        %v527 = vmul.f32 %v513, 1.442695
        %v528 = vpow.pop %v527
        %v529 = vmul.f32 %v514, 1.442695
        %v530 = vpow.pop %v529
        %v531 = vld [vmem:[#allocation3] sm:$0xff]
        %v532 = vmul.f32 %v416, %v531
        %v533 = vsel %vm332, %v516, 0.0
        %v534 = vrot.slane %v533, 4
        %v535 = vadd.f32 %v533, %v534
        %v536 = vrot.slane %v535, 2
        %v537 = vadd.f32 %v535, %v536
        %v538 = vrot.slane %v537, 1
        %v539 = vadd.f32 %v537, %v538
        %v540 = vsel %vm332, %v518, 0.0
        %v541 = vrot.slane %v540, 4
        %v542 = vadd.f32 %v540, %v541
        %v543 = vrot.slane %v542, 2
        %v544 = vadd.f32 %v542, %v543
        %v545 = vrot.slane %v544, 1
        %v546 = vadd.f32 %v544, %v545
        %v547 = vsel %vm332, %v520, 0.0
        %v548 = vrot.slane %v547, 4
        %v549 = vadd.f32 %v547, %v548
        %v550 = vrot.slane %v549, 2
        %v551 = vadd.f32 %v549, %v550
        %v552 = vrot.slane %v551, 1
        %v553 = vadd.f32 %v551, %v552
        %v554 = vsel %vm332, %v522, 0.0
        %v555 = vrot.slane %v554, 4
        %v556 = vadd.f32 %v554, %v555
        %v557 = vrot.slane %v556, 2
        %v558 = vadd.f32 %v556, %v557
        %v559 = vrot.slane %v558, 1
        %v560 = vadd.f32 %v558, %v559
        %v561 = vsel %vm332, %v524, 0.0
        %v562 = vrot.slane %v561, 4
        %v563 = vadd.f32 %v561, %v562
        %v564 = vrot.slane %v563, 2
        %v565 = vadd.f32 %v563, %v564
        %v566 = vrot.slane %v565, 1
        %v567 = vadd.f32 %v565, %v566
        %v568 = vsel %vm332, %v526, 0.0
        %v569 = vrot.slane %v568, 4
        %v570 = vadd.f32 %v568, %v569
        %v571 = vrot.slane %v570, 2
        %v572 = vadd.f32 %v570, %v571
        %v573 = vrot.slane %v572, 1
        %v574 = vadd.f32 %v572, %v573
        %v575 = vsel %vm332, %v528, 0.0
        %v576 = vrot.slane %v575, 4
        %v577 = vadd.f32 %v575, %v576
        %v578 = vrot.slane %v577, 2
        %v579 = vadd.f32 %v577, %v578
        %v580 = vrot.slane %v579, 1
        %v581 = vadd.f32 %v579, %v580
        %v582 = vsel %vm332, %v530, 0.0
        %v583 = vrot.slane %v582, 4
        %v584 = vadd.f32 %v582, %v583
        %v585 = vrot.slane %v584, 2
        %v586 = vadd.f32 %v584, %v585
        %v587 = vrot.slane %v586, 1
        %v588 = vadd.f32 %v586, %v587
        %v597 = vsel %vm398, %v546, %v539
        %v598 = vsel %vm400, %v553, %v597
        %v599 = vsel %vm402, %v560, %v598
        %v600 = vsel %vm404, %v567, %v599
        %v601 = vsel %vm406, %v574, %v600
        %v602 = vsel %vm408, %v581, %v601
        %v603 = vsel %vm410, %v588, %v602
        %v605 = vadd.f32 %v532, %v603
        %606 = vst.msk [vmem:[#allocation3] sm:$0xff] %vm332, %v605
        %v607 = vld [vmem:[#allocation4] sm:$0xff]
        %609 = vset.pattern.permute.xlu0 0
        %610 = vperm.xlu0 %609, %v416
        %v611 = vpop.permute.xlu0 %610
        %v613 = vmul.f32 %v611, %v607
        %615 = vset.pattern.permute.xlu0 0
        %616 = vperm.xlu0 %615, %v516
        %v617 = vpop.permute.xlu0 %616
        %620 = vset.pattern.permute.xlu0 0
        %621 = vperm.xlu0 %620, %v518
        %v622 = vpop.permute.xlu0 %621
        %625 = vset.pattern.permute.xlu0 0
        %626 = vperm.xlu0 %625, %v520
        %v627 = vpop.permute.xlu0 %626
        %630 = vset.pattern.permute.xlu0 0
        %631 = vperm.xlu0 %630, %v522
        %v632 = vpop.permute.xlu0 %631
        %635 = vset.pattern.permute.xlu0 0
        %636 = vperm.xlu0 %635, %v524
        %v637 = vpop.permute.xlu0 %636
        %640 = vset.pattern.permute.xlu0 0
        %641 = vperm.xlu0 %640, %v526
        %v642 = vpop.permute.xlu0 %641
        %645 = vset.pattern.permute.xlu0 0
        %646 = vperm.xlu0 %645, %v528
        %v647 = vpop.permute.xlu0 %646
        %650 = vset.pattern.permute.xlu0 0
        %651 = vperm.xlu0 %650, %v530
        %v652 = vpop.permute.xlu0 %651
        %v654 = vmul.f32 %v278, %v617
        %v655 = vmul.f32 %v279, %v622
        %v656 = vmul.f32 %v280, %v627
        %v657 = vmul.f32 %v281, %v632
        %v658 = vmul.f32 %v282, %v637
        %v659 = vmul.f32 %v283, %v642
        %v660 = vmul.f32 %v284, %v647
        %v661 = vmul.f32 %v285, %v652
        %v662 = vrot.slane %v654, 4
        %v663 = vadd.f32 %v654, %v662
        %v664 = vrot.slane %v663, 2
        %v665 = vadd.f32 %v663, %v664
        %v666 = vrot.slane %v665, 1
        %v667 = vadd.f32 %v665, %v666
        %v668 = vrot.slane %v655, 4
        %v669 = vadd.f32 %v655, %v668
        %v670 = vrot.slane %v669, 2
        %v671 = vadd.f32 %v669, %v670
        %v672 = vrot.slane %v671, 1
        %v673 = vadd.f32 %v671, %v672
        %v674 = vrot.slane %v656, 4
        %v675 = vadd.f32 %v656, %v674
        %v676 = vrot.slane %v675, 2
        %v677 = vadd.f32 %v675, %v676
        %v678 = vrot.slane %v677, 1
        %v679 = vadd.f32 %v677, %v678
        %v680 = vrot.slane %v657, 4
        %v681 = vadd.f32 %v657, %v680
        %v682 = vrot.slane %v681, 2
        %v683 = vadd.f32 %v681, %v682
        %v684 = vrot.slane %v683, 1
        %v685 = vadd.f32 %v683, %v684
        %v686 = vrot.slane %v658, 4
        %v687 = vadd.f32 %v658, %v686
        %v688 = vrot.slane %v687, 2
        %v689 = vadd.f32 %v687, %v688
        %v690 = vrot.slane %v689, 1
        %v691 = vadd.f32 %v689, %v690
        %v692 = vrot.slane %v659, 4
        %v693 = vadd.f32 %v659, %v692
        %v694 = vrot.slane %v693, 2
        %v695 = vadd.f32 %v693, %v694
        %v696 = vrot.slane %v695, 1
        %v697 = vadd.f32 %v695, %v696
        %v698 = vrot.slane %v660, 4
        %v699 = vadd.f32 %v660, %v698
        %v700 = vrot.slane %v699, 2
        %v701 = vadd.f32 %v699, %v700
        %v702 = vrot.slane %v701, 1
        %v703 = vadd.f32 %v701, %v702
        %v704 = vrot.slane %v661, 4
        %v705 = vadd.f32 %v661, %v704
        %v706 = vrot.slane %v705, 2
        %v707 = vadd.f32 %v705, %v706
        %v708 = vrot.slane %v707, 1
        %v709 = vadd.f32 %v707, %v708
        %v718 = vsel %vm398, %v673, %v667
        %v719 = vsel %vm400, %v679, %v718
        %v720 = vsel %vm402, %v685, %v719
        %v721 = vsel %vm404, %v691, %v720
        %v722 = vsel %vm406, %v697, %v721
        %v723 = vsel %vm408, %v703, %v722
        %v724 = vsel %vm410, %v709, %v723
        %v726 = vadd.f32 %v613, %v724
        %727 = vst [vmem:[#allocation4] sm:$0xff] %v726
        %728 = vst.msk [vmem:[#allocation2] sm:$0xff] %vm332, %v413
        %p729 = scmp.eq.s32.totalorder %s29, 3
        // Predicated region
        $region49: #{tpu_custom_call.1} parent=39 // pred_check
          %p730 = pneg %p729
        $region50: #{tpu_custom_call.1} parent=39 // pred_check_branch
          %732 = sbr.rel (%p730) target = $region52
        $region51: #{tpu_custom_call.1} parent=39 // pred_region
          %v733 = vld [vmem:[#allocation4] sm:$0xff]
          %v734 = vld [vmem:[#allocation3] sm:$0xff]
          %v735 = vrcp.pop %v734
          %737 = vset.pattern.permute.xlu0 0
          %738 = vperm.xlu0 %737, %v735
          %v739 = vpop.permute.xlu0 %738
          %v741 = vmul.f32 %v733, %v739
          %742 = vadd.xlane.f32.xlu0 %v741
          %v743 = vpop.xlane.xlu0 %742
          %v744 = vrcp.pop 128.0
          %v745 = vmul.f32 %v743, %v744
          %v746 = vsub.f32 %v741, %v745
          %v747 = vmul.f32 %v746, %v746
          %748 = vadd.xlane.f32.xlu0 %v747
          %v749 = vpop.xlane.xlu0 %748
          %v750 = vmul.f32 %v749, %v744
          %v751 = vadd.f32 %v750, 1e-05
          %v752 = vrsqrt.pop %v751
          %v753 = vmul.f32 %v746, %v752
          %v754 = vld [vmem:[%s3] sm:$0x1]
          %v755 = vld [vmem:[%s4] sm:$0x1]
          %v757 = vlaneseq
          %v758 = vshrl.u32 %v757, 7
          %v759 = vsub.s32 0, %v758
          %v760 = vrot.slane %v754, %v759
          %v762 = vmul.f32 %v753, %v760
          %v764 = vlaneseq
          %v765 = vshrl.u32 %v764, 7
          %v766 = vsub.s32 0, %v765
          %v767 = vrot.slane %v755, %v766
          %v769 = vadd.f32 %v762, %v767
          %v770 = vpack.c.bf16 %v769, %v769
          %771 = vst [vmem:[%s260] sm:$0xf] %v770
        $region52: #{tpu_custom_call.1} parent=39 // pred_fallthru
          _
        %s772 = sand.u32 %s156, 1
        %s773 = scalar_lea.sflag [#allocation8], %s772
        %s774 = sand.u32 %s156, 1
        %s775 = smul.addr %s774, 4
        %s776 = scalar_lea.vmem [#allocation9], %s775
        // Predicated region
        $region53: #{tpu_custom_call.1} parent=39 // pred_check
          %p777 = pneg %p166
        $region54: #{tpu_custom_call.1} parent=39 // pred_check_branch
          %779 = sbr.rel (%p777) target = $region56
        $region55: #{tpu_custom_call.1} parent=39 // pred_region
          %s781 = ssub.s32 64, 64
          %782 = vsyncadd %s773, %s781
          %s783 = smul.addr %s28, 64
          %s784 = scalar_lea.hbm %s5, %s783
          %s786 = sshll.u32 %s776, 4
          %s787 = int_to_ptr.vmem [resolvable:$true] %s786
          %789 = dma.vmem_to_hbm [thread:$0]  %s787, 64, %s784, %s773
        $region56: #{tpu_custom_call.1} parent=39 // pred_fallthru
          _
      $region40: #{tpu_custom_call.1} parent=5 // pred_fallthru
        _
      %p790 = scmp.le.s32.totalorder 2, %s19
      // Predicated region
      $region57: #{tpu_custom_call.1} parent=5 // pred_check
        %p791 = pneg %p790
      $region58: #{tpu_custom_call.1} parent=5 // pred_check_branch
        %793 = sbr.rel (%p791) target = $region60
      $region59: #{tpu_custom_call.1} parent=5 // pred_region
        %s794 = ssub.s32 %s19, 2
        // Predicated region
        $region61: #{tpu_custom_call.1} parent=59 // pred_check
          %p795 = pneg %p172
        $region62: #{tpu_custom_call.1} parent=59 // pred_check_branch
          %797 = sbr.rel (%p795) target = $region64
        $region63: #{tpu_custom_call.1} parent=59 // pred_region
          %s798 = sand.u32 %s157, 1
          %s799 = scalar_lea.sflag [#allocation8], %s798
          %s800 = sand.u32 %s157, 1
          %s801 = smul.addr %s800, 4
          %s802 = scalar_lea.vmem [#allocation9], %s801
          %803 = dma.done %s799, 64
        $region64: #{tpu_custom_call.1} parent=59 // pred_fallthru
          _
      $region60: #{tpu_custom_call.1} parent=5 // pred_fallthru
        _
    $region6: #{tpu_custom_call.1} parent=1 // loop_footer
      %s23 = sadd.s32 1, %s19
    $region7: #{tpu_custom_call.1} parent=1 // loop_footer_branch
      %18 = sbr.rel target = $region3
    $region8: #{tpu_custom_call.1} parent=1 // loop_exit
      _
    %804 = vsyncpa [#allocation7], 1
    %s805 = scalar_lea.sflag [#allocation7], 1
    %806 = vsyncpa %s805, 1
    %807 = vsyncpa [#allocation8], 1
    %s808 = scalar_lea.sflag [#allocation8], 1
    %809 = vsyncpa %s808, 1

</llo_original>
